<compile_context>
chip_gen: v5e
topology: v5e:2x2
jax: 0.10.0
libtpu: 0.0.40
codegen_flags: <defaults>
</compile_context>

<pallas_src>
import jax
import jax.numpy as jnp
from jax.experimental import pallas as pl
from jax.experimental.pallas import tpu as pltpu


def _timestep_embedding_kernel(x_ref, w1_ref, b1_ref, w2_ref, b2_ref, o_ref):
    # linear_1: [tb, C_in] @ [C_in, D] -> f32 accumulation on the MXU.
    # Operands stay in their native dtype (bf16 feeds the MXU directly).
    h = jnp.dot(x_ref[...], w1_ref[...], preferred_element_type=jnp.float32)
    h = h + b1_ref[...]                      # bias already f32 (wrapper pre-cast)

    # SiLU in f32 (sigmoid uses the EUP slot).
    h = h * jax.nn.sigmoid(h)

    # linear_2: match weight dtype (no-op for f32, bf16 for bf16 weights) so the
    # MXU sees matched narrow operands; accumulate in f32.
    y = jnp.dot(h.astype(w2_ref.dtype), w2_ref[...],
                preferred_element_type=jnp.float32)
    y = y + b2_ref[...]

    o_ref[...] = y.astype(o_ref.dtype)


def timestep_embedding(sample, w1, b1, w2, b2, *, block_b=512, compute_dtype=None):
    """Fused TimestepEmbedding forward.

    sample: [B, C_in]; w1: [C_in, D]; b1: [D]; w2: [D, D]; b2: [D].
    Weights are nn.Linear weights pre-transposed to (in_features, out_features).
    compute_dtype: optional narrow dtype (e.g. jnp.bfloat16) for x/w1/w2.
    """
    B, C_in = sample.shape
    D = w1.shape[1]
    assert w1.shape == (C_in, D)
    assert w2.shape == (D, D)
    assert b1.shape == (D,) and b2.shape == (D,)
    # Lane-dense output store path (unmasked vst) relies on this.
    assert D % 128 == 0, "time_embed_dim must be a multiple of 128"

    out_dtype = sample.dtype
    x = sample
    if compute_dtype is not None:
        x = x.astype(compute_dtype)
        w1 = w1.astype(compute_dtype)
        w2 = w2.astype(compute_dtype)

    # Biases as f32 lane-dense rows (bias add + SiLU stay in f32 in-kernel).
    b1_row = b1.reshape(1, D).astype(jnp.float32)
    b2_row = b2.reshape(1, D).astype(jnp.float32)

    # Balanced batch tiling: tiles of ~B/num_tiles rounded to the sublane (8),
    # so pad waste is bounded instead of padding the last tile up to block_b.
    num_b_tiles = pl.cdiv(B, block_b)
    tb = ((pl.cdiv(B, num_b_tiles) + 7) // 8) * 8
    b_pad = num_b_tiles * tb
    if b_pad != B:
        x = jnp.pad(x, ((0, b_pad - B), (0, 0)))

    # N-split of linear_2 when the batch grid collapses to one step: gives the
    # second TensorCore on v7x half of w2 to fetch and half of the linear_2 work
    # (linear_1 is recomputed per column tile; cheap since C_in << D).
    if num_b_tiles == 1 and D % 256 == 0:
        n_tiles = 2
    else:
        n_tiles = 1
    tn = D // n_tiles

    # Explicit scoped-VMEM budget: resident weights/biases (single-buffered) +
    # double-buffered streamed x/out tiles, with 2x margin, capped at 64 MiB so
    # it is valid on every chip (v5e/v6e 128 MiB, v7x 64 MiB physical).
    resident_bytes = (w1.size * w1.dtype.itemsize
                      + D * tn * w2.dtype.itemsize
                      + (D + tn) * 4)
    stream_bytes = 2 * tb * (C_in * x.dtype.itemsize
                             + tn * jnp.dtype(out_dtype).itemsize)
    needed = resident_bytes + stream_bytes
    vmem_limit = int(min(max(2 * needed, 32 * 1024 * 1024), 64 * 1024 * 1024))

    def _resident_spec(block_shape, index_map, resident):
        # Blocks whose index_map is constant over the grid are fetched once;
        # single-buffering them halves their VMEM residency. Falls back to the
        # default buffering on jax versions without BlockSpec.pipeline_mode.
        if resident and hasattr(pl, "Buffered"):
            try:
                return pl.BlockSpec(block_shape, index_map,
                                    pipeline_mode=pl.Buffered(1))
            except TypeError:
                pass
        return pl.BlockSpec(block_shape, index_map)

    def _build_and_call(single_buffer_resident):
        in_specs = [
            pl.BlockSpec((tb, C_in), lambda i, j: (i, 0)),   # streamed activations
            _resident_spec((C_in, D), lambda i, j: (0, 0), single_buffer_resident),
            _resident_spec((1, D), lambda i, j: (0, 0), single_buffer_resident),
            # w2/b2 are only constant (hence single-bufferable) when not N-split.
            _resident_spec((D, tn), lambda i, j: (0, j),
                           single_buffer_resident and n_tiles == 1),
            _resident_spec((1, tn), lambda i, j: (0, j),
                           single_buffer_resident and n_tiles == 1),
        ]
        return pl.pallas_call(
            _timestep_embedding_kernel,
            out_shape=jax.ShapeDtypeStruct((b_pad, D), out_dtype),
            grid=(num_b_tiles, n_tiles),
            in_specs=in_specs,
            out_specs=pl.BlockSpec((tb, tn), lambda i, j: (i, j)),
            compiler_params=pltpu.CompilerParams(
                dimension_semantics=("parallel", "parallel"),
                vmem_limit_bytes=vmem_limit,
            ),
        )(x, w1, b1_row, w2, b2_row)

    try:
        out = _build_and_call(True)
    except Exception:
        # Compat fallback: if this jax/libtpu rejects single-buffered resident
        # blocks, default double-buffering is still functionally identical.
        out = _build_and_call(False)

    if b_pad != B:
        out = out[:B]
    return out


def _reference(sample, w1, b1, w2, b2):
    h = sample @ w1 + b1
    h = h * jax.nn.sigmoid(h)
    return h @ w2 + b2


if __name__ == "__main__":
    k0, k1, k2 = jax.random.split(jax.random.PRNGKey(0), 3)

    def make_inputs(key, batch, c_in, d, scale=0.02):
        k_x, k_w1, k_b1, k_w2, k_b2 = jax.random.split(key, 5)
        sample = jax.random.normal(k_x, (batch, c_in), jnp.float32)
        # nn.Linear weights are (out, in); stored pre-transposed as (in, out).
        w1 = jax.random.normal(k_w1, (c_in, d), jnp.float32) * scale
        b1 = jax.random.normal(k_b1, (d,), jnp.float32) * scale
        w2 = jax.random.normal(k_w2, (d, d), jnp.float32) * scale
        b2 = jax.random.normal(k_b2, (d,), jnp.float32) * scale
        return sample, w1, b1, w2, b2

    # 1) f32 path, single batch tile (grid (1, 1)).
    args = make_inputs(k0, batch=8, c_in=32, d=128)
    out = jax.block_until_ready(timestep_embedding(*args))
    ref = _reference(*args)
    assert out.shape == (8, 128) and out.dtype == jnp.float32
    assert jnp.allclose(out, ref, atol=1e-4, rtol=1e-4)

    # 2) bf16 compute path + N-split of linear_2 (grid (1, 2), D % 256 == 0).
    args = make_inputs(k1, batch=8, c_in=32, d=256)
    out = jax.block_until_ready(
        timestep_embedding(*args, compute_dtype=jnp.bfloat16))
    ref = _reference(*args)
    assert out.shape == (8, 256)
    assert jnp.allclose(out, ref, atol=2e-2, rtol=2e-2)

    # 3) multi-tile streamed batch with padding slice-off (grid (3, 1)).
    args = make_inputs(k2, batch=20, c_in=32, d=128)
    out = jax.block_until_ready(timestep_embedding(*args, block_b=8))
    ref = _reference(*args)
    assert out.shape == (20, 128)
    assert jnp.allclose(out, ref, atol=1e-4, rtol=1e-4)

    print("KERNEL_OK")
</pallas_src>

<mosaic_0001>
module attributes {stable_mosaic.version = 11 : i64} {
  func.func @_timestep_embedding_kernel(%arg0: i32, %arg1: i32, %arg2: memref<8x32xf32, #tpu.memory_space<vmem>>, %arg3: memref<32x128xf32, #tpu.memory_space<vmem>>, %arg4: memref<1x128xf32, #tpu.memory_space<vmem>>, %arg5: memref<128x128xf32, #tpu.memory_space<vmem>>, %arg6: memref<1x128xf32, #tpu.memory_space<vmem>>, %arg7: memref<8x128xf32, #tpu.memory_space<vmem>>) attributes {dimension_semantics = [#tpu.dimension_semantics<parallel>, #tpu.dimension_semantics<parallel>], iteration_bounds = array<i64: 1, 1>, scalar_prefetch = 0 : i64, scratch_operands = 0 : i64, tpu.core_type = #tpu.core_type<tc>, window_params = [{transform_indices = @transform_0, window_bounds = array<i64: 8, 32>}, {pipeline_mode = #tpu.pipeline_mode<synchronous>, transform_indices = @transform_1, window_bounds = array<i64: 32, 128>}, {pipeline_mode = #tpu.pipeline_mode<synchronous>, transform_indices = @transform_2, window_bounds = array<i64: 1, 128>}, {pipeline_mode = #tpu.pipeline_mode<synchronous>, transform_indices = @transform_3, window_bounds = array<i64: 128, 128>}, {pipeline_mode = #tpu.pipeline_mode<synchronous>, transform_indices = @transform_4, window_bounds = array<i64: 1, 128>}, {transform_indices = @transform_5, window_bounds = array<i64: 8, 128>}]} {
    %c0 = arith.constant 0 : index
    %c0_0 = arith.constant 0 : index
    %0 = vector.load %arg2[%c0, %c0_0] : memref<8x32xf32, #tpu.memory_space<vmem>>, vector<8x32xf32>
    %c0_1 = arith.constant 0 : index
    %c0_2 = arith.constant 0 : index
    %1 = vector.load %arg3[%c0_1, %c0_2] : memref<32x128xf32, #tpu.memory_space<vmem>>, vector<32x128xf32>
    %cst = arith.constant dense<0.000000e+00> : vector<8x128xf32>
    %2 = tpu.matmul %0, %1, %cst {dimension_numbers = #tpu.dot_dimension_numbers<[1], [0], [0], [1], [0, 0, 1, 1], [], []>} : vector<8x32xf32>, vector<32x128xf32>, vector<8x128xf32> -> vector<8x128xf32>
    %c0_3 = arith.constant 0 : index
    %c0_4 = arith.constant 0 : index
    %3 = vector.load %arg4[%c0_3, %c0_4] : memref<1x128xf32, #tpu.memory_space<vmem>>, vector<1x128xf32>
    %4 = vector.broadcast %3 : vector<1x128xf32> to vector<8x128xf32>
    %5 = arith.addf %2, %4 : vector<8x128xf32>
    %6 = arith.negf %5 : vector<8x128xf32>
    %7 = math.exp %6 : vector<8x128xf32>
    %cst_5 = arith.constant 1.000000e+00 : f32
    %8 = vector.broadcast %cst_5 : f32 to vector<8x128xf32>
    %9 = arith.addf %8, %7 : vector<8x128xf32>
    %10 = arith.divf %8, %9 : vector<8x128xf32>
    %11 = arith.mulf %5, %10 : vector<8x128xf32>
    %c0_6 = arith.constant 0 : index
    %c0_7 = arith.constant 0 : index
    %12 = vector.load %arg5[%c0_6, %c0_7] : memref<128x128xf32, #tpu.memory_space<vmem>>, vector<128x128xf32>
    %cst_8 = arith.constant dense<0.000000e+00> : vector<8x128xf32>
    %13 = tpu.matmul %11, %12, %cst_8 {dimension_numbers = #tpu.dot_dimension_numbers<[1], [0], [0], [1], [0, 0, 1, 1], [], []>} : vector<8x128xf32>, vector<128x128xf32>, vector<8x128xf32> -> vector<8x128xf32>
    %c0_9 = arith.constant 0 : index
    %c0_10 = arith.constant 0 : index
    %14 = vector.load %arg6[%c0_9, %c0_10] : memref<1x128xf32, #tpu.memory_space<vmem>>, vector<1x128xf32>
    %15 = vector.broadcast %14 : vector<1x128xf32> to vector<8x128xf32>
    %16 = arith.addf %13, %15 : vector<8x128xf32>
    %c0_11 = arith.constant 0 : index
    %c0_12 = arith.constant 0 : index
    %17 = vector.load %arg7[%c0_11, %c0_12] : memref<8x128xf32, #tpu.memory_space<vmem>>, vector<8x128xf32>
    tpu.vector_store %arg7[%c0_11, %c0_12], %16 {strides = array<i32>} : memref<8x128xf32, #tpu.memory_space<vmem>>, vector<8x128xf32>,
    return
  }
  func.func @transform_0(%arg0: i32, %arg1: i32) -> (i32, i32) {
    %c0_i32 = arith.constant 0 : i32
    %c0_i32_0 = arith.constant 0 : i32
    return %arg0, %c0_i32 : i32, i32
  }
  func.func @transform_1(%arg0: i32, %arg1: i32) -> (i32, i32) {
    %c0_i32 = arith.constant 0 : i32
    %c0_i32_0 = arith.constant 0 : i32
    %c0_i32_1 = arith.constant 0 : i32
    return %c0_i32, %c0_i32_0 : i32, i32
  }
  func.func @transform_2(%arg0: i32, %arg1: i32) -> (i32, i32) {
    %c0_i32 = arith.constant 0 : i32
    %c0_i32_0 = arith.constant 0 : i32
    %c0_i32_1 = arith.constant 0 : i32
    return %c0_i32, %c0_i32_0 : i32, i32
  }
  func.func @transform_3(%arg0: i32, %arg1: i32) -> (i32, i32) {
    %c0_i32 = arith.constant 0 : i32
    %c0_i32_0 = arith.constant 0 : i32
    return %c0_i32, %arg1 : i32, i32
  }
  func.func @transform_4(%arg0: i32, %arg1: i32) -> (i32, i32) {
    %c0_i32 = arith.constant 0 : i32
    %c0_i32_0 = arith.constant 0 : i32
    return %c0_i32, %arg1 : i32, i32
  }
  func.func @transform_5(%arg0: i32, %arg1: i32) -> (i32, i32) {
    %c0_i32 = arith.constant 0 : i32
    return %arg0, %arg1 : i32, i32
  }
}

module attributes {stable_mosaic.version = 11 : i64} {
  func.func @_timestep_embedding_kernel(%arg0: i32, %arg1: i32, %arg2: memref<8x32xf32, #tpu.memory_space<vmem>>, %arg3: memref<32x128xf32, #tpu.memory_space<vmem>>, %arg4: memref<1x128xf32, #tpu.memory_space<vmem>>, %arg5: memref<128x128xf32, #tpu.memory_space<vmem>>, %arg6: memref<1x128xf32, #tpu.memory_space<vmem>>, %arg7: memref<8x128xf32, #tpu.memory_space<vmem>>) attributes {dimension_semantics = [#tpu.dimension_semantics<parallel>, #tpu.dimension_semantics<parallel>], iteration_bounds = array<i64: 1, 1>, scalar_prefetch = 0 : i64, scratch_operands = 0 : i64, tpu.core_type = #tpu.core_type<tc>, window_params = [{transform_indices = @transform_0, window_bounds = array<i64: 8, 32>}, {pipeline_mode = #tpu.pipeline_mode<synchronous>, transform_indices = @transform_1, window_bounds = array<i64: 32, 128>}, {pipeline_mode = #tpu.pipeline_mode<synchronous>, transform_indices = @transform_2, window_bounds = array<i64: 1, 128>}, {transform_indices = @transform_3, window_bounds = array<i64: 128, 128>}, {transform_indices = @transform_4, window_bounds = array<i64: 1, 128>}, {transform_indices = @transform_5, window_bounds = array<i64: 8, 128>}]} {
    %c0 = arith.constant 0 : index
    %c0_0 = arith.constant 0 : index
    %0 = vector.load %arg2[%c0, %c0_0] : memref<8x32xf32, #tpu.memory_space<vmem>>, vector<8x32xf32>
    %c0_1 = arith.constant 0 : index
    %c0_2 = arith.constant 0 : index
    %1 = vector.load %arg3[%c0_1, %c0_2] : memref<32x128xf32, #tpu.memory_space<vmem>>, vector<32x128xf32>
    %cst = arith.constant dense<0.000000e+00> : vector<8x128xf32>
    %2 = tpu.matmul %0, %1, %cst {dimension_numbers = #tpu.dot_dimension_numbers<[1], [0], [0], [1], [0, 0, 1, 1], [], []>} : vector<8x32xf32>, vector<32x128xf32>, vector<8x128xf32> -> vector<8x128xf32>
    %c0_3 = arith.constant 0 : index
    %c0_4 = arith.constant 0 : index
    %3 = vector.load %arg4[%c0_3, %c0_4] : memref<1x128xf32, #tpu.memory_space<vmem>>, vector<1x128xf32>
    %4 = vector.broadcast %3 : vector<1x128xf32> to vector<8x128xf32>
    %5 = arith.addf %2, %4 : vector<8x128xf32>
    %6 = arith.negf %5 : vector<8x128xf32>
    %7 = math.exp %6 : vector<8x128xf32>
    %cst_5 = arith.constant 1.000000e+00 : f32
    %8 = vector.broadcast %cst_5 : f32 to vector<8x128xf32>
    %9 = arith.addf %8, %7 : vector<8x128xf32>
    %10 = arith.divf %8, %9 : vector<8x128xf32>
    %11 = arith.mulf %5, %10 : vector<8x128xf32>
    %c0_6 = arith.constant 0 : index
    %c0_7 = arith.constant 0 : index
    %12 = vector.load %arg5[%c0_6, %c0_7] : memref<128x128xf32, #tpu.memory_space<vmem>>, vector<128x128xf32>
    %cst_8 = arith.constant dense<0.000000e+00> : vector<8x128xf32>
    %13 = tpu.matmul %11, %12, %cst_8 {dimension_numbers = #tpu.dot_dimension_numbers<[1], [0], [0], [1], [0, 0, 1, 1], [], []>} : vector<8x128xf32>, vector<128x128xf32>, vector<8x128xf32> -> vector<8x128xf32>
    %c0_9 = arith.constant 0 : index
    %c0_10 = arith.constant 0 : index
    %14 = vector.load %arg6[%c0_9, %c0_10] : memref<1x128xf32, #tpu.memory_space<vmem>>, vector<1x128xf32>
    %15 = vector.broadcast %14 : vector<1x128xf32> to vector<8x128xf32>
    %16 = arith.addf %13, %15 : vector<8x128xf32>
    %c0_11 = arith.constant 0 : index
    %c0_12 = arith.constant 0 : index
    %17 = vector.load %arg7[%c0_11, %c0_12] : memref<8x128xf32, #tpu.memory_space<vmem>>, vector<8x128xf32>
    tpu.vector_store %arg7[%c0_11, %c0_12], %16 {strides = array<i32>} : memref<8x128xf32, #tpu.memory_space<vmem>>, vector<8x128xf32>,
    return
  }
  func.func @transform_0(%arg0: i32, %arg1: i32) -> (i32, i32) {
    %c0_i32 = arith.constant 0 : i32
    %c0_i32_0 = arith.constant 0 : i32
    return %arg0, %c0_i32 : i32, i32
  }
  func.func @transform_1(%arg0: i32, %arg1: i32) -> (i32, i32) {
    %c0_i32 = arith.constant 0 : i32
    %c0_i32_0 = arith.constant 0 : i32
    %c0_i32_1 = arith.constant 0 : i32
    return %c0_i32, %c0_i32_0 : i32, i32
  }
  func.func @transform_2(%arg0: i32, %arg1: i32) -> (i32, i32) {
    %c0_i32 = arith.constant 0 : i32
    %c0_i32_0 = arith.constant 0 : i32
    %c0_i32_1 = arith.constant 0 : i32
    return %c0_i32, %c0_i32_0 : i32, i32
  }
  func.func @transform_3(%arg0: i32, %arg1: i32) -> (i32, i32) {
    %c0_i32 = arith.constant 0 : i32
    %c0_i32_0 = arith.constant 0 : i32
    return %c0_i32, %arg1 : i32, i32
  }
  func.func @transform_4(%arg0: i32, %arg1: i32) -> (i32, i32) {
    %c0_i32 = arith.constant 0 : i32
    %c0_i32_0 = arith.constant 0 : i32
    return %c0_i32, %arg1 : i32, i32
  }
  func.func @transform_5(%arg0: i32, %arg1: i32) -> (i32, i32) {
    %c0_i32 = arith.constant 0 : i32
    return %arg0, %arg1 : i32, i32
  }
}

</mosaic_0001>

<llo_original>
// kernel: tpu_custom_call.1
$region0: #{tpu_custom_call.1}
  #allocation0 [shape = 'u32[]', space=smem, size = 0x4, offset = 0x4, fixed_abs, tag = 'smem constant byte address 0x4 - core index']
  #allocation1 [shape = 'u32[72,128]{1,0:T(1,128)}', space=vmem, size = 0x9000, scoped, tag = 'internal scratch']
  %s0 = inlined_call_operand.hbm [shape: f32[8,32], index: 0, kind: input, shape index: {}]
  %s1 = inlined_call_operand.hbm [shape: f32[32,128], index: 1, kind: input, shape index: {}]
  %s2 = inlined_call_operand.vmem [shape: f32[1,128], index: 2, kind: input, shape index: {}]
  %s3 = inlined_call_operand.hbm [shape: f32[128,128], index: 3, kind: input, shape index: {}]
  %s4 = inlined_call_operand.vmem [shape: f32[1,128], index: 4, kind: input, shape index: {}]
  %s5 = inlined_call_operand.hbm [shape: f32[8,128], index: 5, kind: output, shape index: {}]
  %s6 = sld [smem:[#allocation0]]
  $region42: #{tpu_custom_call.1} parent=0
    _
  %s8 = ssub.s32 1, %s6
  %s9 = scalar_select 0, %s8, %s6
  $region1: #{tpu_custom_call.1} parent=0
    #allocation2 [shape = 'u8[4096]{0}', space=vmem, size = 0x1000, scoped, tag = 'input window, operand 0, single buffered']
    #allocation3 [shape = 's32[1]{0}', space=sflag, size = 0x4, scoped, tag = 'scoped memory for tpu_custom_call.1']
    #allocation4 [shape = 's32[1]{0}', space=sflag, size = 0x4, scoped, tag = 'scoped memory for tpu_custom_call.1']
    #allocation5 [shape = 'u8[16384]{0}', space=vmem, size = 0x4000, scoped, tag = 'input window, operand 1, single buffered']
    #allocation6 [shape = 's32[1]{0}', space=sflag, size = 0x4, scoped, tag = 'scoped memory for tpu_custom_call.1']
    #allocation7 [shape = 'u8[65536]{0}', space=vmem, size = 0x10000, scoped, tag = 'input window, operand 3, single buffered']
    #allocation8 [shape = 'u8[4096]{0}', space=vmem, size = 0x1000, scoped, tag = 'output window, operand 0, single buffered']
    %10 = vsyncpa [#allocation3], 0
    %11 = vsyncpa [#allocation6], 0
    %12 = vsyncpa [#allocation4], 0
    // Predicated region
    $region2: #{tpu_custom_call.1} parent=1 // pred_check
      _
    $region3: #{tpu_custom_call.1} parent=1 // pred_check_branch
      %14 = sbr.rel (0) target = $region5
    $region4: #{tpu_custom_call.1} parent=1 // pred_region
      %16 = vsyncadd [#allocation3], 0
      %s18 = sshll.u32 %s0, 4
      %s19 = int_to_ptr.hbm [resolvable:$true] %s18
      %s20 = sshll.u32 [#allocation2], 4
      %s21 = int_to_ptr.vmem [resolvable:$true] %s20
      %23 = dma.hbm_to_vmem [thread:$0]  %s19, 128, %s21, [#allocation3]
    $region5: #{tpu_custom_call.1} parent=1 // pred_fallthru
      _
    // Predicated region
    $region6: #{tpu_custom_call.1} parent=1 // pred_check
      _
    $region7: #{tpu_custom_call.1} parent=1 // pred_check_branch
      %25 = sbr.rel (0) target = $region9
    $region8: #{tpu_custom_call.1} parent=1 // pred_region
      %27 = vsyncadd [#allocation6], 0
      %s28 = sshll.u32 %s1, 4
      %s29 = int_to_ptr.hbm [resolvable:$true] %s28
      %s30 = sshll.u32 [#allocation5], 4
      %s31 = int_to_ptr.vmem [resolvable:$true] %s30
      %36 = dma.hbm_to_vmem [thread:$0]  %s29, 512, %s31, [#allocation6], 128, 128, 8
    $region9: #{tpu_custom_call.1} parent=1 // pred_fallthru
      _
    // Predicated region
    $region10: #{tpu_custom_call.1} parent=1 // pred_check
      _
    $region11: #{tpu_custom_call.1} parent=1 // pred_check_branch
      %38 = sbr.rel (0) target = $region13
    $region12: #{tpu_custom_call.1} parent=1 // pred_region
      _
    $region13: #{tpu_custom_call.1} parent=1 // pred_fallthru
      _
    // Predicated region
    $region14: #{tpu_custom_call.1} parent=1 // pred_check
      _
    $region15: #{tpu_custom_call.1} parent=1 // pred_check_branch
      %40 = sbr.rel (0) target = $region17
    $region16: #{tpu_custom_call.1} parent=1 // pred_region
      %42 = vsyncadd [#allocation6], 0
      %s43 = sshll.u32 %s3, 4
      %s44 = int_to_ptr.hbm [resolvable:$true] %s43
      %s45 = sshll.u32 [#allocation7], 4
      %s46 = int_to_ptr.vmem [resolvable:$true] %s45
      %51 = dma.hbm_to_vmem [thread:$0]  %s44, 2048, %s46, [#allocation6], 128, 128, 8
    $region17: #{tpu_custom_call.1} parent=1 // pred_fallthru
      _
    // Predicated region
    $region18: #{tpu_custom_call.1} parent=1 // pred_check
      _
    $region19: #{tpu_custom_call.1} parent=1 // pred_check_branch
      %53 = sbr.rel (0) target = $region21
    $region20: #{tpu_custom_call.1} parent=1 // pred_region
      _
    $region21: #{tpu_custom_call.1} parent=1 // pred_fallthru
      _
    // Predicated region
    $region22: #{tpu_custom_call.1} parent=1 // pred_check
      _
    $region23: #{tpu_custom_call.1} parent=1 // pred_check_branch
      %55 = sbr.rel (0) target = $region25
    $region24: #{tpu_custom_call.1} parent=1 // pred_region
      %57 = dma.done [#allocation3], 128
    $region25: #{tpu_custom_call.1} parent=1 // pred_fallthru
      _
    // Predicated region
    $region26: #{tpu_custom_call.1} parent=1 // pred_check
      _
    $region27: #{tpu_custom_call.1} parent=1 // pred_check_branch
      %59 = sbr.rel (0) target = $region29
    $region28: #{tpu_custom_call.1} parent=1 // pred_region
      %61 = dma.done [#allocation6], 512
    $region29: #{tpu_custom_call.1} parent=1 // pred_fallthru
      _
    // Predicated region
    $region30: #{tpu_custom_call.1} parent=1 // pred_check
      _
    $region31: #{tpu_custom_call.1} parent=1 // pred_check_branch
      %63 = sbr.rel (0) target = $region33
    $region32: #{tpu_custom_call.1} parent=1 // pred_region
      %65 = dma.done [#allocation6], 2048
    $region33: #{tpu_custom_call.1} parent=1 // pred_fallthru
      _
    %v66 = vld [vmem:[#allocation2] sm:$0xff]
    %v67 = vld [vmem:[#allocation5] sm:$0xff]
    %v68 = vld [vmem:[#allocation5 + $0x8] sm:$0xff]
    %v69 = vld [vmem:[#allocation5 + $0x10] sm:$0xff]
    %v70 = vld [vmem:[#allocation5 + $0x18] sm:$0xff]
    %v71 = vld [vmem:[%s2] sm:$0x1]
    %v73 = vperm.slane %v71, 0
    %vm75 = vcmask 261120
    %v77 = vsel %vm75, %v66, 0
    %79 = vmatpush.msra.mxu0 0.0
    %80 = vmatpush.msra.mxu0 0.0
    %81 = vmatpush.msra.mxu0 0.0
    %82 = vmatpush.msra.mxu0 0.0
    %83 = vmatpush.msra.mxu0 0.0
    %84 = vmatpush.msra.mxu0 0.0
    %85 = vmatpush.msra.mxu0 0.0
    %86 = vmatpush.msra.mxu0 0.0
    %87 = vmatpush.msra.mxu0 0.0
    %88 = vmatpush.msra.mxu0 0.0
    %89 = vmatpush.msra.mxu0 0.0
    %90 = vmatpush.msra.mxu0 0.0
    %91 = vmatpush.msra.mxu0 %v70
    %92 = vmatpush.msra.mxu0 %v69
    %93 = vmatpush.msra.mxu0 %v68
    %94 = vmatpush.msra.mxu0 %v67
    %95 = vmatmul.f32.gmra.mxu0 %v77
    %v96 = vpop.f32.mrf.mxu0
    %v97 = vadd.f32 %v73, %v96
    %98 = vdwg.mxu0
    %v99 = vxor.u32 %v97, 2147483648
    %v100 = vmul.f32 %v99, 1.442695
    %v101 = vpow.pop %v100
    %v102 = vadd.f32 %v101, 1.0
    %v103 = vrcp.pop %v102
    %v104 = vmul.f32 %v102, %v103
    %v105 = vsub.f32 1.0, %v104
    %v106 = vmul.f32 %v103, %v105
    %v107 = vadd.f32 %v103, %v106
    %vm108 = vweird.f32 %v102
    %vm109 = vweird.f32 %v103
    %vm110 = vmor %vm108, %vm109
    %v111 = vsel %vm110, %v103, %v107
    %v112 = vand.u32 2147483647, %v102
    %vm113 = vcmp.eq.f32.partialorder %v112, 8.507059e+37
    %v114 = vand.u32 %v102, 2147483648
    %v115 = vor.u32 1.1754944e-38, %v114
    %v116 = vsel %vm113, %v115, %v111
    %v117 = vmul.f32 1.0, %v116
    %v118 = vmul.f32 %v97, %v117
    %v119 = vld [vmem:[#allocation7] sm:$0xff]
    %v120 = vld [vmem:[#allocation7 + $0x8] sm:$0xff]
    %v121 = vld [vmem:[#allocation7 + $0x10] sm:$0xff]
    %v122 = vld [vmem:[#allocation7 + $0x18] sm:$0xff]
    %v123 = vld [vmem:[#allocation7 + $0x20] sm:$0xff]
    %v124 = vld [vmem:[#allocation7 + $0x28] sm:$0xff]
    %v125 = vld [vmem:[#allocation7 + $0x30] sm:$0xff]
    %v126 = vld [vmem:[#allocation7 + $0x38] sm:$0xff]
    %v127 = vld [vmem:[#allocation7 + $0x40] sm:$0xff]
    %v128 = vld [vmem:[#allocation7 + $0x48] sm:$0xff]
    %v129 = vld [vmem:[#allocation7 + $0x50] sm:$0xff]
    %v130 = vld [vmem:[#allocation7 + $0x58] sm:$0xff]
    %v131 = vld [vmem:[#allocation7 + $0x60] sm:$0xff]
    %v132 = vld [vmem:[#allocation7 + $0x68] sm:$0xff]
    %v133 = vld [vmem:[#allocation7 + $0x70] sm:$0xff]
    %v134 = vld [vmem:[#allocation7 + $0x78] sm:$0xff]
    %v135 = vld [vmem:[%s4] sm:$0x1]
    %v137 = vperm.slane %v135, 0
    %139 = vmatpush.msra.mxu0 %v134
    %140 = vmatpush.msra.mxu0 %v133
    %141 = vmatpush.msra.mxu0 %v132
    %142 = vmatpush.msra.mxu0 %v131
    %143 = vmatpush.msra.mxu0 %v130
    %144 = vmatpush.msra.mxu0 %v129
    %145 = vmatpush.msra.mxu0 %v128
    %146 = vmatpush.msra.mxu0 %v127
    %147 = vmatpush.msra.mxu0 %v126
    %148 = vmatpush.msra.mxu0 %v125
    %149 = vmatpush.msra.mxu0 %v124
    %150 = vmatpush.msra.mxu0 %v123
    %151 = vmatpush.msra.mxu0 %v122
    %152 = vmatpush.msra.mxu0 %v121
    %153 = vmatpush.msra.mxu0 %v120
    %154 = vmatpush.msra.mxu0 %v119
    %155 = vmatmul.f32.gmra.mxu0 %v118
    %v156 = vpop.f32.mrf.mxu0
    %v157 = vadd.f32 %v137, %v156
    %158 = vdwg.mxu0
    %159 = vst [vmem:[#allocation8] sm:$0xff] %v157
    // Predicated region
    $region34: #{tpu_custom_call.1} parent=1 // pred_check
      _
    $region35: #{tpu_custom_call.1} parent=1 // pred_check_branch
      %161 = sbr.rel (0) target = $region37
    $region36: #{tpu_custom_call.1} parent=1 // pred_region
      %163 = vsyncadd [#allocation4], 0
      %s165 = sshll.u32 [#allocation8], 4
      %s166 = int_to_ptr.vmem [resolvable:$true] %s165
      %s167 = sshll.u32 %s5, 4
      %s168 = int_to_ptr.hbm [resolvable:$true] %s167
      %170 = dma.vmem_to_hbm [thread:$0]  %s166, 128, %s168, [#allocation4]
    $region37: #{tpu_custom_call.1} parent=1 // pred_fallthru
      _
    // Predicated region
    $region38: #{tpu_custom_call.1} parent=1 // pred_check
      _
    $region39: #{tpu_custom_call.1} parent=1 // pred_check_branch
      %172 = sbr.rel (0) target = $region41
    $region40: #{tpu_custom_call.1} parent=1 // pred_region
      %174 = dma.done [#allocation4], 128
    $region41: #{tpu_custom_call.1} parent=1 // pred_fallthru
      _
    %175 = vsyncpa [#allocation3], 1
    %176 = vsyncpa [#allocation6], 1
    %177 = vsyncpa [#allocation4], 1

// kernel: tpu_custom_call.1
$region0: #{tpu_custom_call.1}
  #allocation0 [shape = 'u32[]', space=smem, size = 0x4, offset = 0x4, fixed_abs, tag = 'smem constant byte address 0x4 - core index']
  #allocation1 [shape = 'u32[72,128]{1,0:T(1,128)}', space=vmem, size = 0x9000, scoped, tag = 'internal scratch']
  %s0 = inlined_call_operand.hbm [shape: f32[8,32], index: 0, kind: input, shape index: {}]
  %s1 = inlined_call_operand.hbm [shape: f32[32,128], index: 1, kind: input, shape index: {}]
  %s2 = inlined_call_operand.vmem [shape: f32[1,128], index: 2, kind: input, shape index: {}]
  %s3 = inlined_call_operand.hbm [shape: f32[128,128], index: 3, kind: input, shape index: {}]
  %s4 = inlined_call_operand.vmem [shape: f32[1,128], index: 4, kind: input, shape index: {}]
  %s5 = inlined_call_operand.hbm [shape: f32[8,128], index: 5, kind: output, shape index: {}]
  %s6 = sld [smem:[#allocation0]]
  $region42: #{tpu_custom_call.1} parent=0
    _
  %s8 = ssub.s32 1, %s6
  %s9 = scalar_select 0, %s8, %s6
  $region1: #{tpu_custom_call.1} parent=0
    #allocation2 [shape = 'u8[4096]{0}', space=vmem, size = 0x1000, scoped, tag = 'input window, operand 0, single buffered']
    #allocation3 [shape = 's32[1]{0}', space=sflag, size = 0x4, scoped, tag = 'scoped memory for tpu_custom_call.1']
    #allocation4 [shape = 's32[1]{0}', space=sflag, size = 0x4, scoped, tag = 'scoped memory for tpu_custom_call.1']
    #allocation5 [shape = 'u8[16384]{0}', space=vmem, size = 0x4000, scoped, tag = 'input window, operand 1, single buffered']
    #allocation6 [shape = 's32[1]{0}', space=sflag, size = 0x4, scoped, tag = 'scoped memory for tpu_custom_call.1']
    #allocation7 [shape = 'u8[65536]{0}', space=vmem, size = 0x10000, scoped, tag = 'input window, operand 3, single buffered']
    #allocation8 [shape = 'u8[4096]{0}', space=vmem, size = 0x1000, scoped, tag = 'output window, operand 0, single buffered']
    %10 = vsyncpa [#allocation3], 0
    %11 = vsyncpa [#allocation6], 0
    %12 = vsyncpa [#allocation4], 0
    // Predicated region
    $region2: #{tpu_custom_call.1} parent=1 // pred_check
      _
    $region3: #{tpu_custom_call.1} parent=1 // pred_check_branch
      %14 = sbr.rel (0) target = $region5
    $region4: #{tpu_custom_call.1} parent=1 // pred_region
      %16 = vsyncadd [#allocation3], 0
      %s18 = sshll.u32 %s0, 4
      %s19 = int_to_ptr.hbm [resolvable:$true] %s18
      %s20 = sshll.u32 [#allocation2], 4
      %s21 = int_to_ptr.vmem [resolvable:$true] %s20
      %23 = dma.hbm_to_vmem [thread:$0]  %s19, 128, %s21, [#allocation3]
    $region5: #{tpu_custom_call.1} parent=1 // pred_fallthru
      _
    // Predicated region
    $region6: #{tpu_custom_call.1} parent=1 // pred_check
      _
    $region7: #{tpu_custom_call.1} parent=1 // pred_check_branch
      %25 = sbr.rel (0) target = $region9
    $region8: #{tpu_custom_call.1} parent=1 // pred_region
      %27 = vsyncadd [#allocation6], 0
      %s28 = sshll.u32 %s1, 4
      %s29 = int_to_ptr.hbm [resolvable:$true] %s28
      %s30 = sshll.u32 [#allocation5], 4
      %s31 = int_to_ptr.vmem [resolvable:$true] %s30
      %36 = dma.hbm_to_vmem [thread:$0]  %s29, 512, %s31, [#allocation6], 128, 128, 8
    $region9: #{tpu_custom_call.1} parent=1 // pred_fallthru
      _
    // Predicated region
    $region10: #{tpu_custom_call.1} parent=1 // pred_check
      _
    $region11: #{tpu_custom_call.1} parent=1 // pred_check_branch
      %38 = sbr.rel (0) target = $region13
    $region12: #{tpu_custom_call.1} parent=1 // pred_region
      _
    $region13: #{tpu_custom_call.1} parent=1 // pred_fallthru
      _
    // Predicated region
    $region14: #{tpu_custom_call.1} parent=1 // pred_check
      _
    $region15: #{tpu_custom_call.1} parent=1 // pred_check_branch
      %40 = sbr.rel (0) target = $region17
    $region16: #{tpu_custom_call.1} parent=1 // pred_region
      %42 = vsyncadd [#allocation6], 0
      %s43 = sshll.u32 %s3, 4
      %s44 = int_to_ptr.hbm [resolvable:$true] %s43
      %s45 = sshll.u32 [#allocation7], 4
      %s46 = int_to_ptr.vmem [resolvable:$true] %s45
      %51 = dma.hbm_to_vmem [thread:$0]  %s44, 2048, %s46, [#allocation6], 128, 128, 8
    $region17: #{tpu_custom_call.1} parent=1 // pred_fallthru
      _
    // Predicated region
    $region18: #{tpu_custom_call.1} parent=1 // pred_check
      _
    $region19: #{tpu_custom_call.1} parent=1 // pred_check_branch
      %53 = sbr.rel (0) target = $region21
    $region20: #{tpu_custom_call.1} parent=1 // pred_region
      _
    $region21: #{tpu_custom_call.1} parent=1 // pred_fallthru
      _
    // Predicated region
    $region22: #{tpu_custom_call.1} parent=1 // pred_check
      _
    $region23: #{tpu_custom_call.1} parent=1 // pred_check_branch
      %55 = sbr.rel (0) target = $region25
    $region24: #{tpu_custom_call.1} parent=1 // pred_region
      %57 = dma.done [#allocation3], 128
    $region25: #{tpu_custom_call.1} parent=1 // pred_fallthru
      _
    // Predicated region
    $region26: #{tpu_custom_call.1} parent=1 // pred_check
      _
    $region27: #{tpu_custom_call.1} parent=1 // pred_check_branch
      %59 = sbr.rel (0) target = $region29
    $region28: #{tpu_custom_call.1} parent=1 // pred_region
      %61 = dma.done [#allocation6], 512
    $region29: #{tpu_custom_call.1} parent=1 // pred_fallthru
      _
    // Predicated region
    $region30: #{tpu_custom_call.1} parent=1 // pred_check
      _
    $region31: #{tpu_custom_call.1} parent=1 // pred_check_branch
      %63 = sbr.rel (0) target = $region33
    $region32: #{tpu_custom_call.1} parent=1 // pred_region
      %65 = dma.done [#allocation6], 2048
    $region33: #{tpu_custom_call.1} parent=1 // pred_fallthru
      _
    %v66 = vld [vmem:[#allocation2] sm:$0xff]
    %v67 = vld [vmem:[#allocation5] sm:$0xff]
    %v68 = vld [vmem:[#allocation5 + $0x8] sm:$0xff]
    %v69 = vld [vmem:[#allocation5 + $0x10] sm:$0xff]
    %v70 = vld [vmem:[#allocation5 + $0x18] sm:$0xff]
    %v71 = vld [vmem:[%s2] sm:$0x1]
    %v73 = vperm.slane %v71, 0
    %vm75 = vcmask 261120
    %v77 = vsel %vm75, %v66, 0
    %79 = vmatpush.msra.mxu0 0.0
    %80 = vmatpush.msra.mxu0 0.0
    %81 = vmatpush.msra.mxu0 0.0
    %82 = vmatpush.msra.mxu0 0.0
    %83 = vmatpush.msra.mxu0 0.0
    %84 = vmatpush.msra.mxu0 0.0
    %85 = vmatpush.msra.mxu0 0.0
    %86 = vmatpush.msra.mxu0 0.0
    %87 = vmatpush.msra.mxu0 0.0
    %88 = vmatpush.msra.mxu0 0.0
    %89 = vmatpush.msra.mxu0 0.0
    %90 = vmatpush.msra.mxu0 0.0
    %91 = vmatpush.msra.mxu0 %v70
    %92 = vmatpush.msra.mxu0 %v69
    %93 = vmatpush.msra.mxu0 %v68
    %94 = vmatpush.msra.mxu0 %v67
    %95 = vmatmul.f32.gmra.mxu0 %v77
    %v96 = vpop.f32.mrf.mxu0
    %v97 = vadd.f32 %v73, %v96
    %98 = vdwg.mxu0
    %v99 = vxor.u32 %v97, 2147483648
    %v100 = vmul.f32 %v99, 1.442695
    %v101 = vpow.pop %v100
    %v102 = vadd.f32 %v101, 1.0
    %v103 = vrcp.pop %v102
    %v104 = vmul.f32 %v102, %v103
    %v105 = vsub.f32 1.0, %v104
    %v106 = vmul.f32 %v103, %v105
    %v107 = vadd.f32 %v103, %v106
    %vm108 = vweird.f32 %v102
    %vm109 = vweird.f32 %v103
    %vm110 = vmor %vm108, %vm109
    %v111 = vsel %vm110, %v103, %v107
    %v112 = vand.u32 2147483647, %v102
    %vm113 = vcmp.eq.f32.partialorder %v112, 8.507059e+37
    %v114 = vand.u32 %v102, 2147483648
    %v115 = vor.u32 1.1754944e-38, %v114
    %v116 = vsel %vm113, %v115, %v111
    %v117 = vmul.f32 1.0, %v116
    %v118 = vmul.f32 %v97, %v117
    %v119 = vld [vmem:[#allocation7] sm:$0xff]
    %v120 = vld [vmem:[#allocation7 + $0x8] sm:$0xff]
    %v121 = vld [vmem:[#allocation7 + $0x10] sm:$0xff]
    %v122 = vld [vmem:[#allocation7 + $0x18] sm:$0xff]
    %v123 = vld [vmem:[#allocation7 + $0x20] sm:$0xff]
    %v124 = vld [vmem:[#allocation7 + $0x28] sm:$0xff]
    %v125 = vld [vmem:[#allocation7 + $0x30] sm:$0xff]
    %v126 = vld [vmem:[#allocation7 + $0x38] sm:$0xff]
    %v127 = vld [vmem:[#allocation7 + $0x40] sm:$0xff]
    %v128 = vld [vmem:[#allocation7 + $0x48] sm:$0xff]
    %v129 = vld [vmem:[#allocation7 + $0x50] sm:$0xff]
    %v130 = vld [vmem:[#allocation7 + $0x58] sm:$0xff]
    %v131 = vld [vmem:[#allocation7 + $0x60] sm:$0xff]
    %v132 = vld [vmem:[#allocation7 + $0x68] sm:$0xff]
    %v133 = vld [vmem:[#allocation7 + $0x70] sm:$0xff]
    %v134 = vld [vmem:[#allocation7 + $0x78] sm:$0xff]
    %v135 = vld [vmem:[%s4] sm:$0x1]
    %v137 = vperm.slane %v135, 0
    %139 = vmatpush.msra.mxu0 %v134
    %140 = vmatpush.msra.mxu0 %v133
    %141 = vmatpush.msra.mxu0 %v132
    %142 = vmatpush.msra.mxu0 %v131
    %143 = vmatpush.msra.mxu0 %v130
    %144 = vmatpush.msra.mxu0 %v129
    %145 = vmatpush.msra.mxu0 %v128
    %146 = vmatpush.msra.mxu0 %v127
    %147 = vmatpush.msra.mxu0 %v126
    %148 = vmatpush.msra.mxu0 %v125
    %149 = vmatpush.msra.mxu0 %v124
    %150 = vmatpush.msra.mxu0 %v123
    %151 = vmatpush.msra.mxu0 %v122
    %152 = vmatpush.msra.mxu0 %v121
    %153 = vmatpush.msra.mxu0 %v120
    %154 = vmatpush.msra.mxu0 %v119
    %155 = vmatmul.f32.gmra.mxu0 %v118
    %v156 = vpop.f32.mrf.mxu0
    %v157 = vadd.f32 %v137, %v156
    %158 = vdwg.mxu0
    %159 = vst [vmem:[#allocation8] sm:$0xff] %v157
    // Predicated region
    $region34: #{tpu_custom_call.1} parent=1 // pred_check
      _
    $region35: #{tpu_custom_call.1} parent=1 // pred_check_branch
      %161 = sbr.rel (0) target = $region37
    $region36: #{tpu_custom_call.1} parent=1 // pred_region
      %163 = vsyncadd [#allocation4], 0
      %s165 = sshll.u32 [#allocation8], 4
      %s166 = int_to_ptr.vmem [resolvable:$true] %s165
      %s167 = sshll.u32 %s5, 4
      %s168 = int_to_ptr.hbm [resolvable:$true] %s167
      %170 = dma.vmem_to_hbm [thread:$0]  %s166, 128, %s168, [#allocation4]
    $region37: #{tpu_custom_call.1} parent=1 // pred_fallthru
      _
    // Predicated region
    $region38: #{tpu_custom_call.1} parent=1 // pred_check
      _
    $region39: #{tpu_custom_call.1} parent=1 // pred_check_branch
      %172 = sbr.rel (0) target = $region41
    $region40: #{tpu_custom_call.1} parent=1 // pred_region
      %174 = dma.done [#allocation4], 128
    $region41: #{tpu_custom_call.1} parent=1 // pred_fallthru
      _
    %175 = vsyncpa [#allocation3], 1
    %176 = vsyncpa [#allocation6], 1
    %177 = vsyncpa [#allocation4], 1

</llo_original>
